<compile_context>
chip_gen: v5e
topology: v5e:2x2
jax: 0.10.0
libtpu: 0.0.40
codegen_flags: <defaults>
</compile_context>

<pallas_src>
import jax
import jax.numpy as jnp
from jax.experimental import pallas as pl
from jax.experimental.pallas import tpu as pltpu


def _double_block_kernel(x_ref, w1_ref, w2_ref, s1_ref, b1_ref, s2_ref, b2_ref,
                         o_ref, xpad_ref, hpad_ref):
    """Fused (conv3x3 + BN + ReLU) x2 for one batch element, row-packed layout.

    x_ref : (1, H, W*Cin)   f32   input rows, channels packed on the lane axis
    w*_ref: (3, W*Ci, W*Co) bf16  banded per-dy weight matrices (W-padding folded in)
    s/b   : (1, W*C)        f32   folded BN scale / bias per (w, c) lane
    o_ref : (1, H, W*C2)    f32   output rows (lane-dense)
    xpad/hpad : (H+2, W*C)  f32   VMEM slabs with one zero halo row above/below
    """
    H = x_ref.shape[1]
    WCin = x_ref.shape[-1]
    WC1 = w1_ref.shape[-1]
    WC2 = w2_ref.shape[-1]

    # --- stage 0: H-padded input slab (in-kernel padding, no host jnp.pad) ---
    xpad_ref[...] = jnp.zeros((H + 2, WCin), jnp.float32)
    xpad_ref[1:H + 1, :] = x_ref[0]

    # --- stage 1: conv1 as 3 banded MXU matmuls + BN + ReLU -------------------
    acc1 = jnp.zeros((H, WC1), jnp.float32)
    for dy in range(3):  # dy shift is a pure sublane-offset read of the slab
        acc1 += jnp.dot(xpad_ref[dy:dy + H, :].astype(jnp.bfloat16),
                        w1_ref[dy], preferred_element_type=jnp.float32)
    h1 = jnp.maximum(acc1 * s1_ref[...] + b1_ref[...], 0.0)

    # intermediate stays in VMEM (fused), with its own zero halo rows
    hpad_ref[...] = jnp.zeros((H + 2, WC1), jnp.float32)
    hpad_ref[1:H + 1, :] = h1

    # --- stage 2: conv2 as 3 banded MXU matmuls + BN + ReLU -------------------
    acc2 = jnp.zeros((H, WC2), jnp.float32)
    for dy in range(3):
        acc2 += jnp.dot(hpad_ref[dy:dy + H, :].astype(jnp.bfloat16),
                        w2_ref[dy], preferred_element_type=jnp.float32)
    o_ref[0] = jnp.maximum(acc2 * s2_ref[...] + b2_ref[...], 0.0)


def band_weights(w_hwio, W):
    """(3,3,Cin,Cout) HWIO conv weights -> (3, W*Cin, W*Cout) banded matrices.

    M[dy][(w+dx-1)*Cin + ci, w*Cout + co] = w_hwio[dy, dx, ci, co]; out-of-range
    width taps are dropped, which encodes the zero padding along W.
    """
    mats = []
    for dy in range(3):
        m = 0.0
        for dx in range(3):
            m = m + jnp.kron(jnp.eye(W, W, k=1 - dx, dtype=w_hwio.dtype),
                             w_hwio[dy, dx])
        mats.append(m)
    return jnp.stack(mats)


def fold_bn(conv_bias, gamma, beta, running_mean, running_var, eps=1e-5):
    """Fold conv bias + eval-mode BatchNorm into (scale, bias)."""
    scale = gamma / jnp.sqrt(running_var + eps)
    bias = (conv_bias - running_mean) * scale + beta
    return scale, bias


def double_block(x_nchw, params, eps=1e-5):
    """Pallas implementation of DoubleBlock.forward (NCHW in / NCHW out)."""
    N, Cin, H, W = x_nchw.shape
    C1 = params["w1"].shape[-1]
    C2 = params["w2"].shape[-1]

    # NCHW -> row-packed NHWC (N, H, W*Cin), kept on the host so the Pallas
    # boundary matches PyTorch's NCHW interface.
    # TODO(synk): fold this layout change into the kernel DMA for large shapes.
    x_rows = jnp.transpose(x_nchw, (0, 2, 3, 1)).reshape(N, H, W * Cin)

    # banded, W-padding-folded weights in bf16 (MXU-native)
    w1b = band_weights(params["w1"], W).astype(jnp.bfloat16)
    w2b = band_weights(params["w2"], W).astype(jnp.bfloat16)

    s1, b1 = fold_bn(params["b1"], params["g1"], params["beta1"],
                     params["m1"], params["v1"], eps)
    s2, b2 = fold_bn(params["b2"], params["g2"], params["beta2"],
                     params["m2"], params["v2"], eps)
    # per-channel -> per-(w, c) lane vectors matching the row-packed layout
    s1r, b1r = jnp.tile(s1, W)[None, :], jnp.tile(b1, W)[None, :]
    s2r, b2r = jnp.tile(s2, W)[None, :], jnp.tile(b2, W)[None, :]

    out_rows = pl.pallas_call(
        _double_block_kernel,
        out_shape=jax.ShapeDtypeStruct((N, H, W * C2), jnp.float32),
        grid=(N,),
        in_specs=[
            pl.BlockSpec((1, H, W * Cin), lambda n: (n, 0, 0)),
            pl.BlockSpec((3, W * Cin, W * C1), lambda n: (0, 0, 0)),
            pl.BlockSpec((3, W * C1, W * C2), lambda n: (0, 0, 0)),
            pl.BlockSpec((1, W * C1), lambda n: (0, 0)),
            pl.BlockSpec((1, W * C1), lambda n: (0, 0)),
            pl.BlockSpec((1, W * C2), lambda n: (0, 0)),
            pl.BlockSpec((1, W * C2), lambda n: (0, 0)),
        ],
        out_specs=pl.BlockSpec((1, H, W * C2), lambda n: (n, 0, 0)),
        scratch_shapes=[
            pltpu.VMEM((H + 2, W * Cin), jnp.float32),   # padded input slab
            pltpu.VMEM((H + 2, W * C1), jnp.float32),    # padded conv1 output
        ],
        compiler_params=pltpu.CompilerParams(
            dimension_semantics=("parallel",),            # batch across TCs (v7x)
            vmem_limit_bytes=32 * 1024 * 1024),
        # TODO(synk): add an H-strip grid axis (with halo rows) for images that
        # do not fit a single VMEM slab on v7x's 64 MiB VMEM.
    )(x_rows, w1b, w2b, s1r, b1r, s2r, b2r)

    return jnp.transpose(out_rows.reshape(N, H, W, C2), (0, 3, 1, 2))


def _reference(x_nchw, params):
    """Pure-JAX f32 reference (lax conv) for correctness checking."""
    x = jnp.transpose(x_nchw, (0, 2, 3, 1))
    dn = ("NHWC", "HWIO", "NHWC")

    def step(h, w, cb, g, bt, m, v):
        y = jax.lax.conv_general_dilated(h, w, (1, 1), "SAME",
                                         dimension_numbers=dn) + cb
        y = (y - m) / jnp.sqrt(v + 1e-5) * g + bt
        return jnp.maximum(y, 0.0)

    h = step(x, params["w1"], params["b1"], params["g1"], params["beta1"],
             params["m1"], params["v1"])
    y = step(h, params["w2"], params["b2"], params["g2"], params["beta2"],
             params["m2"], params["v2"])
    return jnp.transpose(y, (0, 3, 1, 2))


if __name__ == "__main__":
    N, Cin, Cout, H, W = 2, 4, 8, 16, 16

    key = jax.random.PRNGKey(0)
    ks = jax.random.split(key, 9)
    x = jax.random.normal(ks[0], (N, Cin, H, W), jnp.float32)

    params = {
        # conv weights (HWIO) and biases
        "w1": 0.1 * jax.random.normal(ks[1], (3, 3, Cin, Cout), jnp.float32),
        "b1": 0.1 * jax.random.normal(ks[2], (Cout,), jnp.float32),
        "w2": 0.1 * jax.random.normal(ks[3], (3, 3, Cout, Cout), jnp.float32),
        "b2": 0.1 * jax.random.normal(ks[4], (Cout,), jnp.float32),
        # BatchNorm affine params
        "g1": 1.0 + 0.1 * jax.random.normal(ks[5], (Cout,), jnp.float32),
        "beta1": 0.1 * jax.random.normal(ks[6], (Cout,), jnp.float32),
        "g2": 1.0 + 0.1 * jax.random.normal(ks[7], (Cout,), jnp.float32),
        "beta2": 0.1 * jax.random.normal(ks[8], (Cout,), jnp.float32),
        # BatchNorm running stats at PyTorch init values (eval mode)
        "m1": jnp.zeros((Cout,), jnp.float32),
        "v1": jnp.ones((Cout,), jnp.float32),
        "m2": jnp.zeros((Cout,), jnp.float32),
        "v2": jnp.ones((Cout,), jnp.float32),
    }
    # TODO(synk): training-mode BatchNorm (batch statistics) not implemented;
    # this matches PyTorch eval()-mode semantics with folded running stats.

    out = jax.block_until_ready(jax.jit(double_block)(x, params))
    ref = jax.block_until_ready(_reference(x, params))

    assert out.shape == (N, Cout, H, W)
    # bf16 matmul operands (f32 accumulation) -> loosened tolerance vs f32 ref.
    assert jnp.allclose(out, ref, atol=5e-2, rtol=5e-2), (
        float(jnp.max(jnp.abs(out - ref))))
    print("KERNEL_OK")
</pallas_src>

<mosaic_0001>
module attributes {stable_mosaic.version = 11 : i64} {
  func.func @_double_block_kernel(%arg0: i32, %arg1: memref<1x16x64xf32, #tpu.memory_space<vmem>>, %arg2: memref<3x64x128xbf16, #tpu.memory_space<vmem>>, %arg3: memref<3x128x128xbf16, #tpu.memory_space<vmem>>, %arg4: memref<1x128xf32, #tpu.memory_space<vmem>>, %arg5: memref<1x128xf32, #tpu.memory_space<vmem>>, %arg6: memref<1x128xf32, #tpu.memory_space<vmem>>, %arg7: memref<1x128xf32, #tpu.memory_space<vmem>>, %arg8: memref<1x16x128xf32, #tpu.memory_space<vmem>>, %arg9: memref<18x64xf32, #tpu.memory_space<vmem>>, %arg10: memref<18x128xf32, #tpu.memory_space<vmem>>) attributes {dimension_semantics = [#tpu.dimension_semantics<parallel>], iteration_bounds = array<i64: 2>, scalar_prefetch = 0 : i64, scratch_operands = 2 : i64, tpu.core_type = #tpu.core_type<tc>, window_params = [{transform_indices = @transform_0, window_bounds = array<i64: 1, 16, 64>}, {pipeline_mode = #tpu.pipeline_mode<synchronous>, transform_indices = @transform_1, window_bounds = array<i64: 3, 64, 128>}, {pipeline_mode = #tpu.pipeline_mode<synchronous>, transform_indices = @transform_2, window_bounds = array<i64: 3, 128, 128>}, {pipeline_mode = #tpu.pipeline_mode<synchronous>, transform_indices = @transform_3, window_bounds = array<i64: 1, 128>}, {pipeline_mode = #tpu.pipeline_mode<synchronous>, transform_indices = @transform_4, window_bounds = array<i64: 1, 128>}, {pipeline_mode = #tpu.pipeline_mode<synchronous>, transform_indices = @transform_5, window_bounds = array<i64: 1, 128>}, {pipeline_mode = #tpu.pipeline_mode<synchronous>, transform_indices = @transform_6, window_bounds = array<i64: 1, 128>}, {transform_indices = @transform_7, window_bounds = array<i64: 1, 16, 128>}]} {
    %cst = arith.constant 0.000000e+00 : f32
    %0 = vector.broadcast %cst : f32 to vector<18x64xf32>
    %c0 = arith.constant 0 : index
    %c0_0 = arith.constant 0 : index
    %1 = vector.load %arg9[%c0, %c0_0] : memref<18x64xf32, #tpu.memory_space<vmem>>, vector<18x64xf32>
    tpu.vector_store %arg9[%c0, %c0_0], %0 {strides = array<i32>} : memref<18x64xf32, #tpu.memory_space<vmem>>, vector<18x64xf32>,
    %c0_1 = arith.constant 0 : index
    %c0_2 = arith.constant 0 : index
    %c0_3 = arith.constant 0 : index
    %2 = vector.load %arg1[%c0_1, %c0_2, %c0_3] : memref<1x16x64xf32, #tpu.memory_space<vmem>>, vector<1x16x64xf32>
    %3 = vector.shape_cast %2 : vector<1x16x64xf32> to vector<16x64xf32>
    %c1 = arith.constant 1 : index
    %c0_4 = arith.constant 0 : index
    %4 = vector.load %arg9[%c1, %c0_4] : memref<18x64xf32, #tpu.memory_space<vmem>>, vector<16x64xf32>
    tpu.vector_store %arg9[%c1, %c0_4], %3 {strides = array<i32>} : memref<18x64xf32, #tpu.memory_space<vmem>>, vector<16x64xf32>,
    %cst_5 = arith.constant 0.000000e+00 : f32
    %5 = vector.broadcast %cst_5 : f32 to vector<16x128xf32>
    %c0_6 = arith.constant 0 : index
    %c0_7 = arith.constant 0 : index
    %6 = vector.load %arg9[%c0_6, %c0_7] : memref<18x64xf32, #tpu.memory_space<vmem>>, vector<16x64xf32>
    %7 = arith.truncf %6 : vector<16x64xf32> to vector<16x64xbf16>
    %c0_8 = arith.constant 0 : index
    %c0_9 = arith.constant 0 : index
    %c0_10 = arith.constant 0 : index
    %8 = vector.load %arg2[%c0_8, %c0_9, %c0_10] : memref<3x64x128xbf16, #tpu.memory_space<vmem>>, vector<1x64x128xbf16>
    %9 = vector.shape_cast %8 : vector<1x64x128xbf16> to vector<64x128xbf16>
    %cst_11 = arith.constant dense<0.000000e+00> : vector<16x128xf32>
    %10 = tpu.matmul %7, %9, %cst_11 {dimension_numbers = #tpu.dot_dimension_numbers<[1], [0], [0], [1], [0, 0, 1, 1], [], []>} : vector<16x64xbf16>, vector<64x128xbf16>, vector<16x128xf32> -> vector<16x128xf32>
    %11 = arith.addf %5, %10 : vector<16x128xf32>
    %c1_12 = arith.constant 1 : index
    %c0_13 = arith.constant 0 : index
    %12 = vector.load %arg9[%c1_12, %c0_13] : memref<18x64xf32, #tpu.memory_space<vmem>>, vector<16x64xf32>
    %13 = arith.truncf %12 : vector<16x64xf32> to vector<16x64xbf16>
    %c1_14 = arith.constant 1 : index
    %c0_15 = arith.constant 0 : index
    %c0_16 = arith.constant 0 : index
    %14 = vector.load %arg2[%c1_14, %c0_15, %c0_16] : memref<3x64x128xbf16, #tpu.memory_space<vmem>>, vector<1x64x128xbf16>
    %15 = vector.shape_cast %14 : vector<1x64x128xbf16> to vector<64x128xbf16>
    %cst_17 = arith.constant dense<0.000000e+00> : vector<16x128xf32>
    %16 = tpu.matmul %13, %15, %cst_17 {dimension_numbers = #tpu.dot_dimension_numbers<[1], [0], [0], [1], [0, 0, 1, 1], [], []>} : vector<16x64xbf16>, vector<64x128xbf16>, vector<16x128xf32> -> vector<16x128xf32>
    %17 = arith.addf %11, %16 : vector<16x128xf32>
    %c2 = arith.constant 2 : index
    %c0_18 = arith.constant 0 : index
    %18 = vector.load %arg9[%c2, %c0_18] : memref<18x64xf32, #tpu.memory_space<vmem>>, vector<16x64xf32>
    %19 = arith.truncf %18 : vector<16x64xf32> to vector<16x64xbf16>
    %c2_19 = arith.constant 2 : index
    %c0_20 = arith.constant 0 : index
    %c0_21 = arith.constant 0 : index
    %20 = vector.load %arg2[%c2_19, %c0_20, %c0_21] : memref<3x64x128xbf16, #tpu.memory_space<vmem>>, vector<1x64x128xbf16>
    %21 = vector.shape_cast %20 : vector<1x64x128xbf16> to vector<64x128xbf16>
    %cst_22 = arith.constant dense<0.000000e+00> : vector<16x128xf32>
    %22 = tpu.matmul %19, %21, %cst_22 {dimension_numbers = #tpu.dot_dimension_numbers<[1], [0], [0], [1], [0, 0, 1, 1], [], []>} : vector<16x64xbf16>, vector<64x128xbf16>, vector<16x128xf32> -> vector<16x128xf32>
    %23 = arith.addf %17, %22 : vector<16x128xf32>
    %c0_23 = arith.constant 0 : index
    %c0_24 = arith.constant 0 : index
    %24 = vector.load %arg4[%c0_23, %c0_24] : memref<1x128xf32, #tpu.memory_space<vmem>>, vector<1x128xf32>
    %25 = vector.broadcast %24 : vector<1x128xf32> to vector<16x128xf32>
    %26 = arith.mulf %23, %25 : vector<16x128xf32>
    %c0_25 = arith.constant 0 : index
    %c0_26 = arith.constant 0 : index
    %27 = vector.load %arg5[%c0_25, %c0_26] : memref<1x128xf32, #tpu.memory_space<vmem>>, vector<1x128xf32>
    %28 = vector.broadcast %27 : vector<1x128xf32> to vector<16x128xf32>
    %29 = arith.addf %26, %28 : vector<16x128xf32>
    %cst_27 = arith.constant 0.000000e+00 : f32
    %30 = vector.broadcast %cst_27 : f32 to vector<16x128xf32>
    %31 = arith.maximumf %29, %30 : vector<16x128xf32>
    %cst_28 = arith.constant 0.000000e+00 : f32
    %32 = vector.broadcast %cst_28 : f32 to vector<18x128xf32>
    %c0_29 = arith.constant 0 : index
    %c0_30 = arith.constant 0 : index
    %33 = vector.load %arg10[%c0_29, %c0_30] : memref<18x128xf32, #tpu.memory_space<vmem>>, vector<18x128xf32>
    tpu.vector_store %arg10[%c0_29, %c0_30], %32 {strides = array<i32>} : memref<18x128xf32, #tpu.memory_space<vmem>>, vector<18x128xf32>,
    %c1_31 = arith.constant 1 : index
    %c0_32 = arith.constant 0 : index
    %34 = vector.load %arg10[%c1_31, %c0_32] : memref<18x128xf32, #tpu.memory_space<vmem>>, vector<16x128xf32>
    tpu.vector_store %arg10[%c1_31, %c0_32], %31 {strides = array<i32>} : memref<18x128xf32, #tpu.memory_space<vmem>>, vector<16x128xf32>,
    %cst_33 = arith.constant 0.000000e+00 : f32
    %35 = vector.broadcast %cst_33 : f32 to vector<16x128xf32>
    %c0_34 = arith.constant 0 : index
    %c0_35 = arith.constant 0 : index
    %36 = vector.load %arg10[%c0_34, %c0_35] : memref<18x128xf32, #tpu.memory_space<vmem>>, vector<16x128xf32>
    %37 = arith.truncf %36 : vector<16x128xf32> to vector<16x128xbf16>
    %c0_36 = arith.constant 0 : index
    %c0_37 = arith.constant 0 : index
    %c0_38 = arith.constant 0 : index
    %38 = vector.load %arg3[%c0_36, %c0_37, %c0_38] : memref<3x128x128xbf16, #tpu.memory_space<vmem>>, vector<1x128x128xbf16>
    %39 = vector.shape_cast %38 : vector<1x128x128xbf16> to vector<128x128xbf16>
    %cst_39 = arith.constant dense<0.000000e+00> : vector<16x128xf32>
    %40 = tpu.matmul %37, %39, %cst_39 {dimension_numbers = #tpu.dot_dimension_numbers<[1], [0], [0], [1], [0, 0, 1, 1], [], []>} : vector<16x128xbf16>, vector<128x128xbf16>, vector<16x128xf32> -> vector<16x128xf32>
    %41 = arith.addf %35, %40 : vector<16x128xf32>
    %c1_40 = arith.constant 1 : index
    %c0_41 = arith.constant 0 : index
    %42 = vector.load %arg10[%c1_40, %c0_41] : memref<18x128xf32, #tpu.memory_space<vmem>>, vector<16x128xf32>
    %43 = arith.truncf %42 : vector<16x128xf32> to vector<16x128xbf16>
    %c1_42 = arith.constant 1 : index
    %c0_43 = arith.constant 0 : index
    %c0_44 = arith.constant 0 : index
    %44 = vector.load %arg3[%c1_42, %c0_43, %c0_44] : memref<3x128x128xbf16, #tpu.memory_space<vmem>>, vector<1x128x128xbf16>
    %45 = vector.shape_cast %44 : vector<1x128x128xbf16> to vector<128x128xbf16>
    %cst_45 = arith.constant dense<0.000000e+00> : vector<16x128xf32>
    %46 = tpu.matmul %43, %45, %cst_45 {dimension_numbers = #tpu.dot_dimension_numbers<[1], [0], [0], [1], [0, 0, 1, 1], [], []>} : vector<16x128xbf16>, vector<128x128xbf16>, vector<16x128xf32> -> vector<16x128xf32>
    %47 = arith.addf %41, %46 : vector<16x128xf32>
    %c2_46 = arith.constant 2 : index
    %c0_47 = arith.constant 0 : index
    %48 = vector.load %arg10[%c2_46, %c0_47] : memref<18x128xf32, #tpu.memory_space<vmem>>, vector<16x128xf32>
    %49 = arith.truncf %48 : vector<16x128xf32> to vector<16x128xbf16>
    %c2_48 = arith.constant 2 : index
    %c0_49 = arith.constant 0 : index
    %c0_50 = arith.constant 0 : index
    %50 = vector.load %arg3[%c2_48, %c0_49, %c0_50] : memref<3x128x128xbf16, #tpu.memory_space<vmem>>, vector<1x128x128xbf16>
    %51 = vector.shape_cast %50 : vector<1x128x128xbf16> to vector<128x128xbf16>
    %cst_51 = arith.constant dense<0.000000e+00> : vector<16x128xf32>
    %52 = tpu.matmul %49, %51, %cst_51 {dimension_numbers = #tpu.dot_dimension_numbers<[1], [0], [0], [1], [0, 0, 1, 1], [], []>} : vector<16x128xbf16>, vector<128x128xbf16>, vector<16x128xf32> -> vector<16x128xf32>
    %53 = arith.addf %47, %52 : vector<16x128xf32>
    %c0_52 = arith.constant 0 : index
    %c0_53 = arith.constant 0 : index
    %54 = vector.load %arg6[%c0_52, %c0_53] : memref<1x128xf32, #tpu.memory_space<vmem>>, vector<1x128xf32>
    %55 = vector.broadcast %54 : vector<1x128xf32> to vector<16x128xf32>
    %56 = arith.mulf %53, %55 : vector<16x128xf32>
    %c0_54 = arith.constant 0 : index
    %c0_55 = arith.constant 0 : index
    %57 = vector.load %arg7[%c0_54, %c0_55] : memref<1x128xf32, #tpu.memory_space<vmem>>, vector<1x128xf32>
    %58 = vector.broadcast %57 : vector<1x128xf32> to vector<16x128xf32>
    %59 = arith.addf %56, %58 : vector<16x128xf32>
    %cst_56 = arith.constant 0.000000e+00 : f32
    %60 = vector.broadcast %cst_56 : f32 to vector<16x128xf32>
    %61 = arith.maximumf %59, %60 : vector<16x128xf32>
    %c0_57 = arith.constant 0 : index
    %c0_58 = arith.constant 0 : index
    %c0_59 = arith.constant 0 : index
    %62 = vector.load %arg8[%c0_57, %c0_58, %c0_59] : memref<1x16x128xf32, #tpu.memory_space<vmem>>, vector<1x16x128xf32>
    %63 = vector.shape_cast %62 : vector<1x16x128xf32> to vector<16x128xf32>
    %64 = vector.shape_cast %61 : vector<16x128xf32> to vector<1x16x128xf32>
    tpu.vector_store %arg8[%c0_57, %c0_58, %c0_59], %64 {strides = array<i32>} : memref<1x16x128xf32, #tpu.memory_space<vmem>>, vector<1x16x128xf32>,
    return
  }
  func.func @transform_0(%arg0: i32) -> (i32, i32, i32) {
    %c0_i32 = arith.constant 0 : i32
    %c0_i32_0 = arith.constant 0 : i32
    %c0_i32_1 = arith.constant 0 : i32
    return %arg0, %c0_i32, %c0_i32_0 : i32, i32, i32
  }
  func.func @transform_1(%arg0: i32) -> (i32, i32, i32) {
    %c0_i32 = arith.constant 0 : i32
    %c0_i32_0 = arith.constant 0 : i32
    %c0_i32_1 = arith.constant 0 : i32
    %c0_i32_2 = arith.constant 0 : i32
    return %c0_i32, %c0_i32_0, %c0_i32_1 : i32, i32, i32
  }
  func.func @transform_2(%arg0: i32) -> (i32, i32, i32) {
    %c0_i32 = arith.constant 0 : i32
    %c0_i32_0 = arith.constant 0 : i32
    %c0_i32_1 = arith.constant 0 : i32
    %c0_i32_2 = arith.constant 0 : i32
    return %c0_i32, %c0_i32_0, %c0_i32_1 : i32, i32, i32
  }
  func.func @transform_3(%arg0: i32) -> (i32, i32) {
    %c0_i32 = arith.constant 0 : i32
    %c0_i32_0 = arith.constant 0 : i32
    %c0_i32_1 = arith.constant 0 : i32
    return %c0_i32, %c0_i32_0 : i32, i32
  }
  func.func @transform_4(%arg0: i32) -> (i32, i32) {
    %c0_i32 = arith.constant 0 : i32
    %c0_i32_0 = arith.constant 0 : i32
    %c0_i32_1 = arith.constant 0 : i32
    return %c0_i32, %c0_i32_0 : i32, i32
  }
  func.func @transform_5(%arg0: i32) -> (i32, i32) {
    %c0_i32 = arith.constant 0 : i32
    %c0_i32_0 = arith.constant 0 : i32
    %c0_i32_1 = arith.constant 0 : i32
    return %c0_i32, %c0_i32_0 : i32, i32
  }
  func.func @transform_6(%arg0: i32) -> (i32, i32) {
    %c0_i32 = arith.constant 0 : i32
    %c0_i32_0 = arith.constant 0 : i32
    %c0_i32_1 = arith.constant 0 : i32
    return %c0_i32, %c0_i32_0 : i32, i32
  }
  func.func @transform_7(%arg0: i32) -> (i32, i32, i32) {
    %c0_i32 = arith.constant 0 : i32
    %c0_i32_0 = arith.constant 0 : i32
    %c0_i32_1 = arith.constant 0 : i32
    return %arg0, %c0_i32, %c0_i32_0 : i32, i32, i32
  }
}

</mosaic_0001>

<llo_original>
// kernel: tile.23
$region0: #{tile.23}
  #allocation0 [shape = 's32[1]{0}', space=sflag, size = 0x4, scoped, tag = 'scoped memory for tile.23']
  %s0 = inlined_call_operand.vmem [shape: f32[8], index: 0, kind: input, shape index: {}]
  %s1 = inlined_call_operand.vmem [shape: f32[16,8], index: 1, kind: output, shape index: {}]
  // Predicated region
  $region2: #{tile.23} parent=0 // pred_check
    _
  $region3: #{tile.23} parent=0 // pred_check_branch
    %3 = sbr.rel (0) target = $region5
  $region4: #{tile.23} parent=0 // pred_region
    _
  $region5: #{tile.23} parent=0 // pred_fallthru
    _
  %v4 = vld [vmem:[%s0] ss:$0 sm:$0xff]
  %5 = vst [vmem:[%s1] sm:$0xff] %v4
  %s6 = scalar_lea.vmem %s1, 8
  %7 = vst [vmem:[%s6] sm:$0xff] %v4

// kernel: tile.24
$region0: #{tile.24}
  %s0 = inlined_call_operand.vmem [shape: f32[16,8], index: 0, kind: input, shape index: {}]
  %s1 = inlined_call_operand.vmem [shape: f32[1,128], index: 1, kind: output, shape index: {}]
  $region1: #{tile.24} parent=0
    #allocation0 [shape = 'u8[4096]{0}', space=vmem, size = 0x1000, scoped, tag = 'scoped mem for output reshape']
    %v2 = vld [vmem:[%s0] sm:$0x1]
    %vm3 = vcmask 64512
    %4 = vst.msk [vmem:[#allocation0] sm:$0x1] %vm3, %v2
    %s5 = scalar_lea.vmem %s0, 15
    %v6 = vld [vmem:[%s5] sm:$0x1]
    %7 = vrot.lane.b32.xlu0 %v6, 120
    %v8 = vpop.permute.xlu0 %7
    %vm9 = vcmask 1048512
    %10 = vst.msk [vmem:[#allocation0] sm:$0x1] %vm9, %v8
    %s11 = scalar_lea.vmem %s0, 14
    %v12 = vld [vmem:[%s11] sm:$0x1]
    %13 = vrot.lane.b32.xlu0 %v12, 112
    %v14 = vpop.permute.xlu0 %13
    %vm15 = vcmask 982912
    %16 = vst.msk [vmem:[#allocation0] sm:$0x1] %vm15, %v14
    %s17 = scalar_lea.vmem %s0, 13
    %v18 = vld [vmem:[%s17] sm:$0x1]
    %19 = vrot.lane.b32.xlu0 %v18, 104
    %v20 = vpop.permute.xlu0 %19
    %vm21 = vcmask 917312
    %22 = vst.msk [vmem:[#allocation0] sm:$0x1] %vm21, %v20
    %s23 = scalar_lea.vmem %s0, 12
    %v24 = vld [vmem:[%s23] sm:$0x1]
    %25 = vrot.lane.b32.xlu0 %v24, 96
    %v26 = vpop.permute.xlu0 %25
    %vm27 = vcmask 851712
    %28 = vst.msk [vmem:[#allocation0] sm:$0x1] %vm27, %v26
    %s29 = scalar_lea.vmem %s0, 11
    %v30 = vld [vmem:[%s29] sm:$0x1]
    %31 = vrot.lane.b32.xlu0 %v30, 88
    %v32 = vpop.permute.xlu0 %31
    %vm33 = vcmask 786112
    %34 = vst.msk [vmem:[#allocation0] sm:$0x1] %vm33, %v32
    %s35 = scalar_lea.vmem %s0, 10
    %v36 = vld [vmem:[%s35] sm:$0x1]
    %37 = vrot.lane.b32.xlu0 %v36, 80
    %v38 = vpop.permute.xlu0 %37
    %vm39 = vcmask 720512
    %40 = vst.msk [vmem:[#allocation0] sm:$0x1] %vm39, %v38
    %s41 = scalar_lea.vmem %s0, 9
    %v42 = vld [vmem:[%s41] sm:$0x1]
    %43 = vrot.lane.b32.xlu0 %v42, 72
    %v44 = vpop.permute.xlu0 %43
    %vm45 = vcmask 654912
    %46 = vst.msk [vmem:[#allocation0] sm:$0x1] %vm45, %v44
    %s47 = scalar_lea.vmem %s0, 8
    %v48 = vld [vmem:[%s47] sm:$0x1]
    %49 = vrot.lane.b32.xlu0 %v48, 64
    %v50 = vpop.permute.xlu0 %49
    %vm51 = vcmask 589312
    %52 = vst.msk [vmem:[#allocation0] sm:$0x1] %vm51, %v50
    %s53 = scalar_lea.vmem %s0, 7
    %v54 = vld [vmem:[%s53] sm:$0x1]
    %55 = vrot.lane.b32.xlu0 %v54, 56
    %v56 = vpop.permute.xlu0 %55
    %vm57 = vcmask 523712
    %58 = vst.msk [vmem:[#allocation0] sm:$0x1] %vm57, %v56
    %s59 = scalar_lea.vmem %s0, 6
    %v60 = vld [vmem:[%s59] sm:$0x1]
    %61 = vrot.lane.b32.xlu0 %v60, 48
    %v62 = vpop.permute.xlu0 %61
    %vm63 = vcmask 458112
    %64 = vst.msk [vmem:[#allocation0] sm:$0x1] %vm63, %v62
    %s65 = scalar_lea.vmem %s0, 5
    %v66 = vld [vmem:[%s65] sm:$0x1]
    %67 = vrot.lane.b32.xlu0 %v66, 40
    %v68 = vpop.permute.xlu0 %67
    %vm69 = vcmask 392512
    %70 = vst.msk [vmem:[#allocation0] sm:$0x1] %vm69, %v68
    %s71 = scalar_lea.vmem %s0, 4
    %v72 = vld [vmem:[%s71] sm:$0x1]
    %73 = vrot.lane.b32.xlu0 %v72, 32
    %v74 = vpop.permute.xlu0 %73
    %vm75 = vcmask 326912
    %76 = vst.msk [vmem:[#allocation0] sm:$0x1] %vm75, %v74
    %s77 = scalar_lea.vmem %s0, 3
    %v78 = vld [vmem:[%s77] sm:$0x1]
    %79 = vrot.lane.b32.xlu0 %v78, 24
    %v80 = vpop.permute.xlu0 %79
    %vm81 = vcmask 261312
    %82 = vst.msk [vmem:[#allocation0] sm:$0x1] %vm81, %v80
    %s83 = scalar_lea.vmem %s0, 2
    %v84 = vld [vmem:[%s83] sm:$0x1]
    %85 = vrot.lane.b32.xlu0 %v84, 16
    %v86 = vpop.permute.xlu0 %85
    %vm87 = vcmask 195712
    %88 = vst.msk [vmem:[#allocation0] sm:$0x1] %vm87, %v86
    %s89 = scalar_lea.vmem %s0, 1
    %v90 = vld [vmem:[%s89] sm:$0x1]
    %91 = vrot.lane.b32.xlu0 %v90, 8
    %v92 = vpop.permute.xlu0 %91
    %vm93 = vcmask 130112
    %94 = vst.msk [vmem:[#allocation0] sm:$0x1] %vm93, %v92
    %s96 = ssub.s32 2, 1
    %v97 = vld [vmem:[#allocation0] sm:%s96]
    %s99 = ssub.s32 2, 1
    %100 = vst [vmem:[%s1] sm:%s99] %v97

// kernel: double_block.1
$region0: #{double_block.1}
  #allocation0 [shape = 'u32[]', space=smem, size = 0x4, offset = 0x4, fixed_abs, tag = 'smem constant byte address 0x4 - core index']
  #allocation1 [shape = 'u32[72,128]{1,0:T(1,128)}', space=vmem, size = 0x9000, scoped, tag = 'internal scratch']
  #allocation2 [shape = 'f32[18,64]{1,0:T(8,128)}', space=vmem, size = 0x3000, scoped, tag = 'scratch operand']
  #allocation3 [shape = 'f32[18,128]{1,0:T(8,128)}', space=vmem, size = 0x3000, scoped, tag = 'scratch operand']
  %s0 = inlined_call_operand.vmem [shape: f32[2,16,64], index: 0, kind: input, shape index: {}]
  %s1 = inlined_call_operand.vmem [shape: bf16[3,64,128], index: 1, kind: input, shape index: {}]
  %s2 = inlined_call_operand.vmem [shape: bf16[3,128,128], index: 2, kind: input, shape index: {}]
  %s3 = inlined_call_operand.vmem [shape: f32[1,128], index: 3, kind: input, shape index: {}]
  %s4 = inlined_call_operand.vmem [shape: f32[1,128], index: 4, kind: input, shape index: {}]
  %s5 = inlined_call_operand.vmem [shape: f32[1,128], index: 5, kind: input, shape index: {}]
  %s6 = inlined_call_operand.vmem [shape: f32[1,128], index: 6, kind: input, shape index: {}]
  %s7 = inlined_call_operand.vmem [shape: f32[2,16,128], index: 7, kind: output, shape index: {}]
  %s8 = sld [smem:[#allocation0]]
  $region61: #{double_block.1} parent=0
    _
  %s10 = ssub.s32 1, %s8
  %s11 = scalar_select 0, %s10, %s8
  loop: start=0, step=1, limit=4
  $region2: #{double_block.1} parent=0 // loop_pre_header
    _
  $region3: #{double_block.1} parent=0 // loop_header
    %s13 = sphi 0, %s17
    %p14 = scmp.ge.s32.totalorder %s13, 4
    %s23 = sphi 0, %s25
    %s26 = sphi 0, %s23
    %s27 = sphi 0, %s26
    %s43 = sphi 0, %s27
    %s47 = sphi 0, %s47
    %s49 = sphi 0, %s47
    %s50 = sphi 0, %s49
    %s64 = sphi 0, %s50
    %s68 = sphi 0, %s68
    %s70 = sphi 0, %s68
    %s71 = sphi 0, %s70
    %s85 = sphi 0, %s71
    %s89 = sphi 0, %s89
    %s91 = sphi 0, %s89
    %s92 = sphi 0, %s91
    %s106 = sphi 0, %s92
    %s110 = sphi 0, %s110
    %s112 = sphi 0, %s110
    %s113 = sphi 0, %s112
    %s127 = sphi 0, %s113
    %s131 = sphi 0, %s131
    %s133 = sphi 0, %s131
    %s134 = sphi 0, %s133
    %s148 = sphi 0, %s134
    %s152 = sphi 0, %s152
    %s154 = sphi 0, %s152
    %s155 = sphi 0, %s154
    %s169 = sphi 0, %s155
    %s175 = sphi 0, %s177
    %s178 = sphi 0, %s175
    %s179 = sphi 0, %s178
    %s195 = sphi 0, %s179
  $region4: #{double_block.1} parent=0 // loop_header_branch
    %16 = sbr.rel (%p14) target = $region8
  $region5: #{double_block.1} parent=0 // loop_body
    %s18 = ssub.s32 %s13, 1
    %s19 = ssub.s32 %s13, 2
    %s20 = sadd.s32 %s13, 1
    %s21 = ssub.s32 %s13, %s20
    %p22 = scmp.eq.s32.totalorder %s21, 0
    %s24 = sadd.s32 %s23, 1
    %s25 = scalar_select %p22, %s23, %s24
    %p28 = pneg %p22
    %p29 = scmp.eq.s32.totalorder %s13, 1
    %p30 = por %p28, %p29
    %p31 = scmp.ne.s32.totalorder %s23, %s26
    %p32 = scmp.eq.s32.totalorder %s13, 0
    %p33 = por %p31, %p32
    %p34 = scmp.ne.s32.totalorder %s23, %s26
    %p35 = scmp.eq.s32.totalorder %s18, 1
    %p36 = por %p34, %p35
    %p37 = scmp.ne.s32.totalorder %s26, %s27
    %p38 = scmp.eq.s32.totalorder %s18, 0
    %p39 = por %p37, %p38
    %p40 = scmp.ne.s32.totalorder %s26, %s27
    %p41 = scmp.eq.s32.totalorder %s19, 1
    %p42 = por %p40, %p41
    %p44 = scmp.ne.s32.totalorder %s27, %s43
    %p45 = scmp.eq.s32.totalorder %s19, 0
    %p46 = por %p44, %p45
    %s48 = sadd.s32 %s47, 1
    %p51 = scmp.eq.s32.totalorder %s13, 1
    %p52 = scmp.ne.s32.totalorder %s47, %s49
    %p53 = scmp.eq.s32.totalorder %s13, 0
    %p54 = por %p52, %p53
    %p55 = scmp.ne.s32.totalorder %s47, %s49
    %p56 = scmp.eq.s32.totalorder %s18, 1
    %p57 = por %p55, %p56
    %p58 = scmp.ne.s32.totalorder %s49, %s50
    %p59 = scmp.eq.s32.totalorder %s18, 0
    %p60 = por %p58, %p59
    %p61 = scmp.ne.s32.totalorder %s49, %s50
    %p62 = scmp.eq.s32.totalorder %s19, 1
    %p63 = por %p61, %p62
    %p65 = scmp.ne.s32.totalorder %s50, %s64
    %p66 = scmp.eq.s32.totalorder %s19, 0
    %p67 = por %p65, %p66
    %s69 = sadd.s32 %s68, 1
    %p72 = scmp.eq.s32.totalorder %s13, 1
    %p73 = scmp.ne.s32.totalorder %s68, %s70
    %p74 = scmp.eq.s32.totalorder %s13, 0
    %p75 = por %p73, %p74
    %p76 = scmp.ne.s32.totalorder %s68, %s70
    %p77 = scmp.eq.s32.totalorder %s18, 1
    %p78 = por %p76, %p77
    %p79 = scmp.ne.s32.totalorder %s70, %s71
    %p80 = scmp.eq.s32.totalorder %s18, 0
    %p81 = por %p79, %p80
    %p82 = scmp.ne.s32.totalorder %s70, %s71
    %p83 = scmp.eq.s32.totalorder %s19, 1
    %p84 = por %p82, %p83
    %p86 = scmp.ne.s32.totalorder %s71, %s85
    %p87 = scmp.eq.s32.totalorder %s19, 0
    %p88 = por %p86, %p87
    %s90 = sadd.s32 %s89, 1
    %p93 = scmp.eq.s32.totalorder %s13, 1
    %p94 = scmp.ne.s32.totalorder %s89, %s91
    %p95 = scmp.eq.s32.totalorder %s13, 0
    %p96 = por %p94, %p95
    %p97 = scmp.ne.s32.totalorder %s89, %s91
    %p98 = scmp.eq.s32.totalorder %s18, 1
    %p99 = por %p97, %p98
    %p100 = scmp.ne.s32.totalorder %s91, %s92
    %p101 = scmp.eq.s32.totalorder %s18, 0
    %p102 = por %p100, %p101
    %p103 = scmp.ne.s32.totalorder %s91, %s92
    %p104 = scmp.eq.s32.totalorder %s19, 1
    %p105 = por %p103, %p104
    %p107 = scmp.ne.s32.totalorder %s92, %s106
    %p108 = scmp.eq.s32.totalorder %s19, 0
    %p109 = por %p107, %p108
    %s111 = sadd.s32 %s110, 1
    %p114 = scmp.eq.s32.totalorder %s13, 1
    %p115 = scmp.ne.s32.totalorder %s110, %s112
    %p116 = scmp.eq.s32.totalorder %s13, 0
    %p117 = por %p115, %p116
    %p118 = scmp.ne.s32.totalorder %s110, %s112
    %p119 = scmp.eq.s32.totalorder %s18, 1
    %p120 = por %p118, %p119
    %p121 = scmp.ne.s32.totalorder %s112, %s113
    %p122 = scmp.eq.s32.totalorder %s18, 0
    %p123 = por %p121, %p122
    %p124 = scmp.ne.s32.totalorder %s112, %s113
    %p125 = scmp.eq.s32.totalorder %s19, 1
    %p126 = por %p124, %p125
    %p128 = scmp.ne.s32.totalorder %s113, %s127
    %p129 = scmp.eq.s32.totalorder %s19, 0
    %p130 = por %p128, %p129
    %s132 = sadd.s32 %s131, 1
    %p135 = scmp.eq.s32.totalorder %s13, 1
    %p136 = scmp.ne.s32.totalorder %s131, %s133
    %p137 = scmp.eq.s32.totalorder %s13, 0
    %p138 = por %p136, %p137
    %p139 = scmp.ne.s32.totalorder %s131, %s133
    %p140 = scmp.eq.s32.totalorder %s18, 1
    %p141 = por %p139, %p140
    %p142 = scmp.ne.s32.totalorder %s133, %s134
    %p143 = scmp.eq.s32.totalorder %s18, 0
    %p144 = por %p142, %p143
    %p145 = scmp.ne.s32.totalorder %s133, %s134
    %p146 = scmp.eq.s32.totalorder %s19, 1
    %p147 = por %p145, %p146
    %p149 = scmp.ne.s32.totalorder %s134, %s148
    %p150 = scmp.eq.s32.totalorder %s19, 0
    %p151 = por %p149, %p150
    %s153 = sadd.s32 %s152, 1
    %p156 = scmp.eq.s32.totalorder %s13, 1
    %p157 = scmp.ne.s32.totalorder %s152, %s154
    %p158 = scmp.eq.s32.totalorder %s13, 0
    %p159 = por %p157, %p158
    %p160 = scmp.ne.s32.totalorder %s152, %s154
    %p161 = scmp.eq.s32.totalorder %s18, 1
    %p162 = por %p160, %p161
    %p163 = scmp.ne.s32.totalorder %s154, %s155
    %p164 = scmp.eq.s32.totalorder %s18, 0
    %p165 = por %p163, %p164
    %p166 = scmp.ne.s32.totalorder %s154, %s155
    %p167 = scmp.eq.s32.totalorder %s19, 1
    %p168 = por %p166, %p167
    %p170 = scmp.ne.s32.totalorder %s155, %s169
    %p171 = scmp.eq.s32.totalorder %s19, 0
    %p172 = por %p170, %p171
    %s173 = ssub.s32 %s13, %s20
    %p174 = scmp.eq.s32.totalorder %s173, 0
    %s176 = sadd.s32 %s175, 1
    %s177 = scalar_select %p174, %s175, %s176
    %p180 = pneg %p174
    %p181 = scmp.eq.s32.totalorder %s13, 1
    %p182 = por %p180, %p181
    %p183 = scmp.ne.s32.totalorder %s175, %s178
    %p184 = scmp.eq.s32.totalorder %s13, 0
    %p185 = por %p183, %p184
    %p186 = scmp.ne.s32.totalorder %s175, %s178
    %p187 = scmp.eq.s32.totalorder %s18, 1
    %p188 = por %p186, %p187
    %p189 = scmp.ne.s32.totalorder %s178, %s179
    %p190 = scmp.eq.s32.totalorder %s18, 0
    %p191 = por %p189, %p190
    %p192 = scmp.ne.s32.totalorder %s178, %s179
    %p193 = scmp.eq.s32.totalorder %s19, 1
    %p194 = por %p192, %p193
    %p196 = scmp.ne.s32.totalorder %s179, %s195
    %p197 = scmp.eq.s32.totalorder %s19, 0
    %p198 = por %p196, %p197
    %p199 = scmp.le.s32.totalorder 1, %s13
    %p200 = scmp.lt.s32.totalorder %s13, 3
    %p201 = pnand %p199, %p200
    %p202 = pneg %p201
    // Predicated region
    $region9: #{double_block.1} parent=5 // pred_check
      _
    $region10: #{double_block.1} parent=5 // pred_check_branch
      %204 = sbr.rel (%p201) target = $region12
    $region11: #{double_block.1} parent=5 // pred_region
      %s205 = ssub.s32 %s13, 1
      // Predicated region
      $region13: #{double_block.1} parent=11 // pred_check
        %p206 = pneg %p60
      $region14: #{double_block.1} parent=11 // pred_check_branch
        %208 = sbr.rel (%p206) target = $region16
      $region15: #{double_block.1} parent=11 // pred_region
        _
      $region16: #{double_block.1} parent=11 // pred_fallthru
        _
      // Predicated region
      $region17: #{double_block.1} parent=11 // pred_check
        %p209 = pneg %p81
      $region18: #{double_block.1} parent=11 // pred_check_branch
        %211 = sbr.rel (%p209) target = $region20
      $region19: #{double_block.1} parent=11 // pred_region
        _
      $region20: #{double_block.1} parent=11 // pred_fallthru
        _
      // Predicated region
      $region21: #{double_block.1} parent=11 // pred_check
        %p212 = pneg %p102
      $region22: #{double_block.1} parent=11 // pred_check_branch
        %214 = sbr.rel (%p212) target = $region24
      $region23: #{double_block.1} parent=11 // pred_region
        _
      $region24: #{double_block.1} parent=11 // pred_fallthru
        _
      // Predicated region
      $region25: #{double_block.1} parent=11 // pred_check
        %p215 = pneg %p123
      $region26: #{double_block.1} parent=11 // pred_check_branch
        %217 = sbr.rel (%p215) target = $region28
      $region27: #{double_block.1} parent=11 // pred_region
        _
      $region28: #{double_block.1} parent=11 // pred_fallthru
        _
      // Predicated region
      $region29: #{double_block.1} parent=11 // pred_check
        %p218 = pneg %p144
      $region30: #{double_block.1} parent=11 // pred_check_branch
        %220 = sbr.rel (%p218) target = $region32
      $region31: #{double_block.1} parent=11 // pred_region
        _
      $region32: #{double_block.1} parent=11 // pred_fallthru
        _
      // Predicated region
      $region33: #{double_block.1} parent=11 // pred_check
        %p221 = pneg %p165
      $region34: #{double_block.1} parent=11 // pred_check_branch
        %223 = sbr.rel (%p221) target = $region36
      $region35: #{double_block.1} parent=11 // pred_region
        _
      $region36: #{double_block.1} parent=11 // pred_fallthru
        _
    $region12: #{double_block.1} parent=5 // pred_fallthru
      _
    %p224 = scmp.lt.s32.totalorder %s13, 2
    // Predicated region
    $region37: #{double_block.1} parent=5 // pred_check
      %p225 = pneg %p224
    $region38: #{double_block.1} parent=5 // pred_check_branch
      %227 = sbr.rel (%p225) target = $region40
    $region39: #{double_block.1} parent=5 // pred_region
      // Predicated region
      $region41: #{double_block.1} parent=39 // pred_check
        %p228 = pneg %p33
      $region42: #{double_block.1} parent=39 // pred_check_branch
        %230 = sbr.rel (%p228) target = $region44
      $region43: #{double_block.1} parent=39 // pred_region
        %p231 = scmp.lt.s32.totalorder %s13, 1
        %s232 = scalar_select %p231, %s13, 1
        %s233 = smul.addr %s232, 2
        %s234 = smul.addr %s233, 8
        %s235 = scalar_lea.vmem %s0, %s234
      $region44: #{double_block.1} parent=39 // pred_fallthru
        _
    $region40: #{double_block.1} parent=5 // pred_fallthru
      _
    %p236 = scmp.le.s32.totalorder 1, %s13
    %p237 = scmp.lt.s32.totalorder %s13, 3
    %p238 = pnand %p236, %p237
    %p239 = pneg %p238
    // Predicated region
    $region45: #{double_block.1} parent=5 // pred_check
      _
    $region46: #{double_block.1} parent=5 // pred_check_branch
      %241 = sbr.rel (%p238) target = $region48
    $region47: #{double_block.1} parent=5 // pred_region
      %s242 = ssub.s32 %s13, 1
      %p243 = scmp.lt.s32.totalorder %s18, 1
      %s244 = scalar_select %p243, %s18, 1
      %s245 = smul.addr %s244, 2
      %s246 = smul.addr %s245, 8
      %s247 = scalar_lea.vmem %s0, %s246
      %p248 = pneg %p39
      %p249 = pneg %p36
      %p250 = pneg %p60
      %p251 = pneg %p57
      %p252 = pneg %p81
      %p253 = pneg %p78
      %p254 = pneg %p102
      %p255 = pneg %p99
      %p256 = pneg %p123
      %p257 = pneg %p120
      %p258 = pneg %p144
      %p259 = pneg %p141
      %p260 = pneg %p165
      %p261 = pneg %p162
      %p262 = pneg %p191
      %p263 = pneg %p188
      %p264 = scmp.lt.s32.totalorder %s18, 1
      %s265 = scalar_select %p264, %s18, 1
      %s266 = smul.addr %s265, 2
      %s267 = smul.addr %s266, 8
      %s268 = scalar_lea.vmem %s7, %s267
      %p269 = scmp.lt.s32.totalorder %s18, 1
      %s270 = scalar_select %p269, %s18, 1
      %s271 = smul.addr %s270, 2
      %s272 = smul.addr %s271, 8
      %s273 = scalar_lea.vmem %s0, %s272
      %p274 = scmp.lt.s32.totalorder %s18, 1
      %s275 = scalar_select %p274, %s18, 1
      %s276 = smul.addr %s275, 2
      %s277 = smul.addr %s276, 8
      %s278 = scalar_lea.vmem %s7, %s277
      %vm280 = vcmask 523264
      %281 = vst.msk [vmem:[#allocation2] sm:$0xff] %vm280, 0.0
      %282 = vst.msk [vmem:[#allocation2 + $0x8] sm:$0xff] %vm280, 0.0
      %vm283 = vcmask 517120
      %284 = vst.msk [vmem:[#allocation2 + $0x10] sm:$0x3] %vm283, 0.0
      %v285 = vld [vmem:[%s273] sm:$0xff]
      %v286 = vld [vmem:[%s273 + $0x8] sm:$0xff]
      %287 = vst.msk [vmem:[#allocation2 + $0x1] sm:$0xff] %vm280, %v285
      %288 = vst.msk [vmem:[#allocation2 + $0x9] sm:$0xff] %vm280, %v286
      %v289 = vld [vmem:[#allocation2] sm:$0xff]
      %v290 = vld [vmem:[#allocation2 + $0x8] sm:$0xff]
      %v291 = vpack.c.bf16 %v290, %v289
      %v292 = vld [vmem:[%s1] sm:$0xf]
      %v293 = vld [vmem:[%s1 + $0x4] sm:$0xf]
      %v294 = vld [vmem:[%s1 + $0x8] sm:$0xf]
      %v295 = vld [vmem:[%s1 + $0xc] sm:$0xf]
      %v296 = vld [vmem:[%s1 + $0x10] sm:$0xf]
      %v297 = vld [vmem:[%s1 + $0x14] sm:$0xf]
      %v298 = vld [vmem:[%s1 + $0x18] sm:$0xf]
      %v299 = vld [vmem:[%s1 + $0x1c] sm:$0xf]
      %v300 = vld [vmem:[#allocation2 + $0x1] sm:$0xff]
      %v301 = vld [vmem:[#allocation2 + $0x9] sm:$0xff]
      %v302 = vpack.c.bf16 %v301, %v300
      %s303 = scalar_lea.vmem %s1, 32
      %v304 = vld [vmem:[%s303] sm:$0xf]
      %v305 = vld [vmem:[%s303 + $0x4] sm:$0xf]
      %v306 = vld [vmem:[%s303 + $0x8] sm:$0xf]
      %v307 = vld [vmem:[%s303 + $0xc] sm:$0xf]
      %v308 = vld [vmem:[%s303 + $0x10] sm:$0xf]
      %v309 = vld [vmem:[%s303 + $0x14] sm:$0xf]
      %v310 = vld [vmem:[%s303 + $0x18] sm:$0xf]
      %v311 = vld [vmem:[%s303 + $0x1c] sm:$0xf]
      %v320 = vunpack.c.l.b16 %v304
      %v321 = vunpack.c.l.b16 %v305
      %v322 = vunpack.c.l.b16 %v306
      %v323 = vunpack.c.l.b16 %v307
      %v324 = vunpack.c.l.b16 %v308
      %v325 = vunpack.c.l.b16 %v309
      %v326 = vunpack.c.l.b16 %v310
      %v327 = vunpack.c.l.b16 %v311
      %v328 = vpack.c.b16 %v321, %v320
      %v329 = vpack.c.b16 %v323, %v322
      %v330 = vpack.c.b16 %v325, %v324
      %v331 = vpack.c.b16 %v327, %v326
      %v337 = vsel %vm280, %v302, 0
      %339 = vmatpush.bf16.msra.mxu0 0
      %340 = vmatpush.bf16.msra.mxu0 0
      %341 = vmatpush.bf16.msra.mxu0 0
      %342 = vmatpush.bf16.msra.mxu0 0
      %343 = vmatpush.bf16.msra.mxu0 %v331
      %344 = vmatpush.bf16.msra.mxu0 %v330
      %345 = vmatpush.bf16.msra.mxu0 %v329
      %346 = vmatpush.bf16.msra.mxu0 %v328
      %347 = vmatmul.bf16.gmra.mxu0 %v337
      %v348 = vpop.f32.mrf.mxu0
      %v349 = vadd.f32 0.0, %v348
      %v350 = vpop.f32.mrf.mxu0
      %v351 = vadd.f32 0.0, %v350
      %352 = vdwg.mxu0
      %v361 = vunpack.c.l.b16 %v292
      %v362 = vunpack.c.l.b16 %v293
      %v363 = vunpack.c.l.b16 %v294
      %v364 = vunpack.c.l.b16 %v295
      %v365 = vunpack.c.l.b16 %v296
      %v366 = vunpack.c.l.b16 %v297
      %v367 = vunpack.c.l.b16 %v298
      %v368 = vunpack.c.l.b16 %v299
      %v369 = vpack.c.b16 %v362, %v361
      %v370 = vpack.c.b16 %v364, %v363
      %v371 = vpack.c.b16 %v366, %v365
      %v372 = vpack.c.b16 %v368, %v367
      %v378 = vsel %vm280, %v291, 0
      %380 = vmatpush.bf16.msra.mxu0 0
      %381 = vmatpush.bf16.msra.mxu0 0
      %382 = vmatpush.bf16.msra.mxu0 0
      %383 = vmatpush.bf16.msra.mxu0 0
      %384 = vmatpush.bf16.msra.mxu0 %v372
      %385 = vmatpush.bf16.msra.mxu0 %v371
      %386 = vmatpush.bf16.msra.mxu0 %v370
      %387 = vmatpush.bf16.msra.mxu0 %v369
      %388 = vmatmul.bf16.gmra.mxu0 %v378
      %v389 = vpop.f32.mrf.mxu0
      %v390 = vadd.f32 %v349, %v389
      %v391 = vpop.f32.mrf.mxu0
      %v392 = vadd.f32 %v351, %v391
      %393 = vdwg.mxu0
      %v394 = vld [vmem:[#allocation2 + $0x2] sm:$0xff]
      %v395 = vld [vmem:[#allocation2 + $0xa] sm:$0xff]
      %v396 = vpack.c.bf16 %v395, %v394
      %s397 = scalar_lea.vmem %s1, 64
      %v398 = vld [vmem:[%s397] sm:$0xf]
      %v399 = vld [vmem:[%s397 + $0x4] sm:$0xf]
      %v400 = vld [vmem:[%s397 + $0x8] sm:$0xf]
      %v401 = vld [vmem:[%s397 + $0xc] sm:$0xf]
      %v402 = vld [vmem:[%s397 + $0x10] sm:$0xf]
      %v403 = vld [vmem:[%s397 + $0x14] sm:$0xf]
      %v404 = vld [vmem:[%s397 + $0x18] sm:$0xf]
      %v405 = vld [vmem:[%s397 + $0x1c] sm:$0xf]
      %v414 = vunpack.c.l.b16 %v398
      %v415 = vunpack.c.l.b16 %v399
      %v416 = vunpack.c.l.b16 %v400
      %v417 = vunpack.c.l.b16 %v401
      %v418 = vunpack.c.l.b16 %v402
      %v419 = vunpack.c.l.b16 %v403
      %v420 = vunpack.c.l.b16 %v404
      %v421 = vunpack.c.l.b16 %v405
      %v422 = vpack.c.b16 %v415, %v414
      %v423 = vpack.c.b16 %v417, %v416
      %v424 = vpack.c.b16 %v419, %v418
      %v425 = vpack.c.b16 %v421, %v420
      %v431 = vsel %vm280, %v396, 0
      %433 = vmatpush.bf16.msra.mxu0 0
      %434 = vmatpush.bf16.msra.mxu0 0
      %435 = vmatpush.bf16.msra.mxu0 0
      %436 = vmatpush.bf16.msra.mxu0 0
      %437 = vmatpush.bf16.msra.mxu0 %v425
      %438 = vmatpush.bf16.msra.mxu0 %v424
      %439 = vmatpush.bf16.msra.mxu0 %v423
      %440 = vmatpush.bf16.msra.mxu0 %v422
      %441 = vmatmul.bf16.gmra.mxu0 %v431
      %v442 = vpop.f32.mrf.mxu0
      %v443 = vadd.f32 0.0, %v442
      %v444 = vpop.f32.mrf.mxu0
      %v445 = vadd.f32 0.0, %v444
      %446 = vdwg.mxu0
      %v447 = vadd.f32 %v390, %v443
      %v448 = vadd.f32 %v392, %v445
      %v449 = vld [vmem:[%s3] sm:$0x1]
      %v451 = vperm.slane %v449, 0
      %v453 = vmul.f32 %v447, %v451
      %v454 = vmul.f32 %v448, %v451
      %v455 = vld [vmem:[%s4] sm:$0x1]
      %v457 = vperm.slane %v455, 0
      %v459 = vadd.f32 %v453, %v457
      %v460 = vadd.f32 %v454, %v457
      %v461 = vmax.f32 %v459, 0.0
      %v462 = vmax.f32 %v460, 0.0
      %463 = vst [vmem:[#allocation3] sm:$0xff] 0.0
      %464 = vst [vmem:[#allocation3 + $0x8] sm:$0xff] 0.0
      %465 = vst [vmem:[#allocation3 + $0x10] sm:$0x3] 0.0
      %466 = vst [vmem:[#allocation3 + $0x1] sm:$0xff] %v461
      %467 = vst [vmem:[#allocation3 + $0x9] sm:$0xff] %v462
      %v468 = vld [vmem:[#allocation3] sm:$0xff]
      %v469 = vld [vmem:[#allocation3 + $0x8] sm:$0xff]
      %v470 = vpack.c.bf16 %v469, %v468
      %v471 = vld [vmem:[%s2] sm:$0xf]
      %v472 = vld [vmem:[%s2 + $0x4] sm:$0xf]
      %v473 = vld [vmem:[%s2 + $0x8] sm:$0xf]
      %v474 = vld [vmem:[%s2 + $0xc] sm:$0xf]
      %v475 = vld [vmem:[%s2 + $0x10] sm:$0xf]
      %v476 = vld [vmem:[%s2 + $0x14] sm:$0xf]
      %v477 = vld [vmem:[%s2 + $0x18] sm:$0xf]
      %v478 = vld [vmem:[%s2 + $0x1c] sm:$0xf]
      %v479 = vld [vmem:[%s2 + $0x20] sm:$0xf]
      %v480 = vld [vmem:[%s2 + $0x24] sm:$0xf]
      %v481 = vld [vmem:[%s2 + $0x28] sm:$0xf]
      %v482 = vld [vmem:[%s2 + $0x2c] sm:$0xf]
      %v483 = vld [vmem:[%s2 + $0x30] sm:$0xf]
      %v484 = vld [vmem:[%s2 + $0x34] sm:$0xf]
      %v485 = vld [vmem:[%s2 + $0x38] sm:$0xf]
      %v486 = vld [vmem:[%s2 + $0x3c] sm:$0xf]
      %v487 = vld [vmem:[#allocation3 + $0x1] sm:$0xff]
      %v488 = vld [vmem:[#allocation3 + $0x9] sm:$0xff]
      %v489 = vpack.c.bf16 %v488, %v487
      %s490 = scalar_lea.vmem %s2, 64
      %v491 = vld [vmem:[%s490] sm:$0xf]
      %v492 = vld [vmem:[%s490 + $0x4] sm:$0xf]
      %v493 = vld [vmem:[%s490 + $0x8] sm:$0xf]
      %v494 = vld [vmem:[%s490 + $0xc] sm:$0xf]
      %v495 = vld [vmem:[%s490 + $0x10] sm:$0xf]
      %v496 = vld [vmem:[%s490 + $0x14] sm:$0xf]
      %v497 = vld [vmem:[%s490 + $0x18] sm:$0xf]
      %v498 = vld [vmem:[%s490 + $0x1c] sm:$0xf]
      %v499 = vld [vmem:[%s490 + $0x20] sm:$0xf]
      %v500 = vld [vmem:[%s490 + $0x24] sm:$0xf]
      %v501 = vld [vmem:[%s490 + $0x28] sm:$0xf]
      %v502 = vld [vmem:[%s490 + $0x2c] sm:$0xf]
      %v503 = vld [vmem:[%s490 + $0x30] sm:$0xf]
      %v504 = vld [vmem:[%s490 + $0x34] sm:$0xf]
      %v505 = vld [vmem:[%s490 + $0x38] sm:$0xf]
      %v506 = vld [vmem:[%s490 + $0x3c] sm:$0xf]
      %v523 = vunpack.c.l.b16 %v491
      %v524 = vunpack.c.l.b16 %v492
      %v525 = vunpack.c.l.b16 %v493
      %v526 = vunpack.c.l.b16 %v494
      %v527 = vunpack.c.l.b16 %v495
      %v528 = vunpack.c.l.b16 %v496
      %v529 = vunpack.c.l.b16 %v497
      %v530 = vunpack.c.l.b16 %v498
      %v531 = vunpack.c.l.b16 %v499
      %v532 = vunpack.c.l.b16 %v500
      %v533 = vunpack.c.l.b16 %v501
      %v534 = vunpack.c.l.b16 %v502
      %v535 = vunpack.c.l.b16 %v503
      %v536 = vunpack.c.l.b16 %v504
      %v537 = vunpack.c.l.b16 %v505
      %v538 = vunpack.c.l.b16 %v506
      %v539 = vpack.c.b16 %v524, %v523
      %v540 = vpack.c.b16 %v526, %v525
      %v541 = vpack.c.b16 %v528, %v527
      %v542 = vpack.c.b16 %v530, %v529
      %v543 = vpack.c.b16 %v532, %v531
      %v544 = vpack.c.b16 %v534, %v533
      %v545 = vpack.c.b16 %v536, %v535
      %v546 = vpack.c.b16 %v538, %v537
      %555 = vmatpush.bf16.msra.mxu0 %v546
      %556 = vmatpush.bf16.msra.mxu0 %v545
      %557 = vmatpush.bf16.msra.mxu0 %v544
      %558 = vmatpush.bf16.msra.mxu0 %v543
      %559 = vmatpush.bf16.msra.mxu0 %v542
      %560 = vmatpush.bf16.msra.mxu0 %v541
      %561 = vmatpush.bf16.msra.mxu0 %v540
      %562 = vmatpush.bf16.msra.mxu0 %v539
      %563 = vmatmul.bf16.gmra.mxu0 %v489
      %v564 = vpop.f32.mrf.mxu0
      %v565 = vadd.f32 0.0, %v564
      %v566 = vpop.f32.mrf.mxu0
      %v567 = vadd.f32 0.0, %v566
      %568 = vdwg.mxu0
      %v585 = vunpack.c.l.b16 %v471
      %v586 = vunpack.c.l.b16 %v472
      %v587 = vunpack.c.l.b16 %v473
      %v588 = vunpack.c.l.b16 %v474
      %v589 = vunpack.c.l.b16 %v475
      %v590 = vunpack.c.l.b16 %v476
      %v591 = vunpack.c.l.b16 %v477
      %v592 = vunpack.c.l.b16 %v478
      %v593 = vunpack.c.l.b16 %v479
      %v594 = vunpack.c.l.b16 %v480
      %v595 = vunpack.c.l.b16 %v481
      %v596 = vunpack.c.l.b16 %v482
      %v597 = vunpack.c.l.b16 %v483
      %v598 = vunpack.c.l.b16 %v484
      %v599 = vunpack.c.l.b16 %v485
      %v600 = vunpack.c.l.b16 %v486
      %v601 = vpack.c.b16 %v586, %v585
      %v602 = vpack.c.b16 %v588, %v587
      %v603 = vpack.c.b16 %v590, %v589
      %v604 = vpack.c.b16 %v592, %v591
      %v605 = vpack.c.b16 %v594, %v593
      %v606 = vpack.c.b16 %v596, %v595
      %v607 = vpack.c.b16 %v598, %v597
      %v608 = vpack.c.b16 %v600, %v599
      %617 = vmatpush.bf16.msra.mxu0 %v608
      %618 = vmatpush.bf16.msra.mxu0 %v607
      %619 = vmatpush.bf16.msra.mxu0 %v606
      %620 = vmatpush.bf16.msra.mxu0 %v605
      %621 = vmatpush.bf16.msra.mxu0 %v604
      %622 = vmatpush.bf16.msra.mxu0 %v603
      %623 = vmatpush.bf16.msra.mxu0 %v602
      %624 = vmatpush.bf16.msra.mxu0 %v601
      %625 = vmatmul.bf16.gmra.mxu0 %v470
      %v626 = vpop.f32.mrf.mxu0
      %v627 = vadd.f32 %v565, %v626
      %v628 = vpop.f32.mrf.mxu0
      %v629 = vadd.f32 %v567, %v628
      %630 = vdwg.mxu0
      %v631 = vld [vmem:[#allocation3 + $0x2] sm:$0xff]
      %v632 = vld [vmem:[#allocation3 + $0xa] sm:$0xff]
      %v633 = vpack.c.bf16 %v632, %v631
      %s634 = scalar_lea.vmem %s2, 128
      %v635 = vld [vmem:[%s634] sm:$0xf]
      %v636 = vld [vmem:[%s634 + $0x4] sm:$0xf]
      %v637 = vld [vmem:[%s634 + $0x8] sm:$0xf]
      %v638 = vld [vmem:[%s634 + $0xc] sm:$0xf]
      %v639 = vld [vmem:[%s634 + $0x10] sm:$0xf]
      %v640 = vld [vmem:[%s634 + $0x14] sm:$0xf]
      %v641 = vld [vmem:[%s634 + $0x18] sm:$0xf]
      %v642 = vld [vmem:[%s634 + $0x1c] sm:$0xf]
      %v643 = vld [vmem:[%s634 + $0x20] sm:$0xf]
      %v644 = vld [vmem:[%s634 + $0x24] sm:$0xf]
      %v645 = vld [vmem:[%s634 + $0x28] sm:$0xf]
      %v646 = vld [vmem:[%s634 + $0x2c] sm:$0xf]
      %v647 = vld [vmem:[%s634 + $0x30] sm:$0xf]
      %v648 = vld [vmem:[%s634 + $0x34] sm:$0xf]
      %v649 = vld [vmem:[%s634 + $0x38] sm:$0xf]
      %v650 = vld [vmem:[%s634 + $0x3c] sm:$0xf]
      %v667 = vunpack.c.l.b16 %v635
      %v668 = vunpack.c.l.b16 %v636
      %v669 = vunpack.c.l.b16 %v637
      %v670 = vunpack.c.l.b16 %v638
      %v671 = vunpack.c.l.b16 %v639
      %v672 = vunpack.c.l.b16 %v640
      %v673 = vunpack.c.l.b16 %v641
      %v674 = vunpack.c.l.b16 %v642
      %v675 = vunpack.c.l.b16 %v643
      %v676 = vunpack.c.l.b16 %v644
      %v677 = vunpack.c.l.b16 %v645
      %v678 = vunpack.c.l.b16 %v646
      %v679 = vunpack.c.l.b16 %v647
      %v680 = vunpack.c.l.b16 %v648
      %v681 = vunpack.c.l.b16 %v649
      %v682 = vunpack.c.l.b16 %v650
      %v683 = vpack.c.b16 %v668, %v667
      %v684 = vpack.c.b16 %v670, %v669
      %v685 = vpack.c.b16 %v672, %v671
      %v686 = vpack.c.b16 %v674, %v673
      %v687 = vpack.c.b16 %v676, %v675
      %v688 = vpack.c.b16 %v678, %v677
      %v689 = vpack.c.b16 %v680, %v679
      %v690 = vpack.c.b16 %v682, %v681
      %699 = vmatpush.bf16.msra.mxu0 %v690
      %700 = vmatpush.bf16.msra.mxu0 %v689
      %701 = vmatpush.bf16.msra.mxu0 %v688
      %702 = vmatpush.bf16.msra.mxu0 %v687
      %703 = vmatpush.bf16.msra.mxu0 %v686
      %704 = vmatpush.bf16.msra.mxu0 %v685
      %705 = vmatpush.bf16.msra.mxu0 %v684
      %706 = vmatpush.bf16.msra.mxu0 %v683
      %707 = vmatmul.bf16.gmra.mxu0 %v633
      %v708 = vpop.f32.mrf.mxu0
      %v709 = vadd.f32 0.0, %v708
      %v710 = vpop.f32.mrf.mxu0
      %v711 = vadd.f32 0.0, %v710
      %712 = vdwg.mxu0
      %v713 = vadd.f32 %v627, %v709
      %v714 = vadd.f32 %v629, %v711
      %v715 = vld [vmem:[%s5] sm:$0x1]
      %v717 = vperm.slane %v715, 0
      %v719 = vmul.f32 %v713, %v717
      %v720 = vmul.f32 %v714, %v717
      %v721 = vld [vmem:[%s6] sm:$0x1]
      %v723 = vperm.slane %v721, 0
      %v725 = vadd.f32 %v719, %v723
      %v726 = vadd.f32 %v720, %v723
      %v727 = vmax.f32 %v725, 0.0
      %v728 = vmax.f32 %v726, 0.0
      %729 = vst [vmem:[%s278] sm:$0xff] %v727
      %730 = vst [vmem:[%s278 + $0x8] sm:$0xff] %v728
      %p731 = scmp.lt.s32.totalorder %s18, 1
      %s732 = scalar_select %p731, %s18, 1
      %s733 = smul.addr %s732, 2
      %s734 = smul.addr %s733, 8
      %s735 = scalar_lea.vmem %s7, %s734
      // Predicated region
      $region49: #{double_block.1} parent=47 // pred_check
        %p736 = pneg %p188
      $region50: #{double_block.1} parent=47 // pred_check_branch
        %738 = sbr.rel (%p736) target = $region52
      $region51: #{double_block.1} parent=47 // pred_region
        _
      $region52: #{double_block.1} parent=47 // pred_fallthru
        _
    $region48: #{double_block.1} parent=5 // pred_fallthru
      _
    %p739 = scmp.le.s32.totalorder 2, %s13
    // Predicated region
    $region53: #{double_block.1} parent=5 // pred_check
      %p740 = pneg %p739
    $region54: #{double_block.1} parent=5 // pred_check_branch
      %742 = sbr.rel (%p740) target = $region56
    $region55: #{double_block.1} parent=5 // pred_region
      %s743 = ssub.s32 %s13, 2
      // Predicated region
      $region57: #{double_block.1} parent=55 // pred_check
        %p744 = pneg %p194
      $region58: #{double_block.1} parent=55 // pred_check_branch
        %746 = sbr.rel (%p744) target = $region60
      $region59: #{double_block.1} parent=55 // pred_region
        %p747 = scmp.lt.s32.totalorder %s19, 1
        %s748 = scalar_select %p747, %s19, 1
        %s749 = smul.addr %s748, 2
        %s750 = smul.addr %s749, 8
        %s751 = scalar_lea.vmem %s7, %s750
      $region60: #{double_block.1} parent=55 // pred_fallthru
        _
    $region56: #{double_block.1} parent=5 // pred_fallthru
      _
  $region6: #{double_block.1} parent=0 // loop_footer
    %s17 = sadd.s32 1, %s13
  $region7: #{double_block.1} parent=0 // loop_footer_branch
    %12 = sbr.rel target = $region3
  $region8: #{double_block.1} parent=0 // loop_exit
    _

</llo_original>
